<compile_context>
chip_gen: v7x
topology: tpu7x:2x2x1
jax: 0.10.0
libtpu: 0.0.40
codegen_flags: <defaults>
</compile_context>

<pallas_src>
import functools

import jax
import jax.numpy as jnp
import numpy as np
from jax.experimental import pallas as pl
from jax.experimental.pallas import tpu as pltpu


def _decoder_kernel(prior_is_bern, out_feats,
                    z_ref,
                    w1_ref, b1_ref,
                    w2_ref, b2_ref,
                    w3_ref, b3_ref,
                    wh_ref, bh_ref,
                    out_ref):
    # Hidden stack: three (Linear -> ReLU) blocks. MXU inputs in bf16, f32 accum.
    h = jnp.dot(z_ref[...].astype(jnp.bfloat16), w1_ref[...],
                preferred_element_type=jnp.float32) + b1_ref[...]
    h = jnp.maximum(h, 0.0)
    h = jnp.dot(h.astype(jnp.bfloat16), w2_ref[...],
                preferred_element_type=jnp.float32) + b2_ref[...]
    h = jnp.maximum(h, 0.0)
    h = jnp.dot(h.astype(jnp.bfloat16), w3_ref[...],
                preferred_element_type=jnp.float32) + b3_ref[...]
    h = jnp.maximum(h, 0.0)

    # Fused mu|log_sigma head: single matmul, single lane-dense store.
    y = jnp.dot(h.astype(jnp.bfloat16), wh_ref[...],
                preferred_element_type=jnp.float32) + bh_ref[...]
    if prior_is_bern:
        # Sigmoid only on the mu half (first out_feats columns).  Full-vreg
        # EUP sigmoid + VPU select; no cross-lane movement, store stays unmasked.
        col = jax.lax.broadcasted_iota(jnp.int32, y.shape, dimension=1)
        y = jnp.where(col < out_feats, jax.nn.sigmoid(y), y)
    out_ref[...] = y.astype(out_ref.dtype)


def _pick_batch_tile(batch, block_batch):
    """Pick a batch tile (multiple of 8 sublanes) and the padded batch size."""
    b_pad8 = -(-batch // 8) * 8
    if b_pad8 <= block_batch:
        return int(b_pad8), int(b_pad8)
    tb = max((block_batch // 8) * 8, 8)
    b_pad = -(-batch // tb) * tb
    return int(tb), int(b_pad)


def linear_decoder_forward(z, params, *, prior="Bern", input_dim=(3, 8, 8),
                           block_batch=1024):
    """Run the full LinearDecoder forward on-chip in one Pallas call.

    z: (B, zd_dim) float32
    params: dict with w1,b1,w2,b2,w3,b3,wmu,bmu,wls,bls (weights (in,out),
            biases (1,out)), all float32.
    returns (x_pro, log_sigma), each of shape (B, *input_dim), float32.
    """
    B, zd_dim = z.shape
    out_feats = int(np.prod(input_dim))
    assert params["wmu"].shape[1] == out_feats
    assert params["wls"].shape[1] == out_feats
    fused_feats = 2 * out_feats

    # --- parameter prep (could be hoisted/cached by the caller) ------------
    # bf16 weights: halves HBM->VMEM weight traffic, enables the MXU bf16 path.
    w1 = params["w1"].astype(jnp.bfloat16)
    w2 = params["w2"].astype(jnp.bfloat16)
    w3 = params["w3"].astype(jnp.bfloat16)
    w_head = jnp.concatenate([params["wmu"], params["wls"]], axis=1).astype(jnp.bfloat16)
    b1 = params["b1"].astype(jnp.float32)
    b2 = params["b2"].astype(jnp.float32)
    b3 = params["b3"].astype(jnp.float32)
    b_head = jnp.concatenate([params["bmu"], params["bls"]], axis=1).astype(jnp.float32)

    # --- batch tiling ------------------------------------------------------
    TB, B_pad = _pick_batch_tile(B, block_batch)
    z_in = jnp.pad(z, ((0, B_pad - B), (0, 0))) if B_pad != B else z
    grid = (B_pad // TB,)

    # Weights/biases stay resident in VMEM across all batch tiles.
    def _resident(shape):
        return pl.BlockSpec(shape, lambda i: (0, 0))

    in_specs = [
        pl.BlockSpec((TB, zd_dim), lambda i: (i, 0)),   # z: tiled along batch
        _resident(w1.shape), _resident(b1.shape),
        _resident(w2.shape), _resident(b2.shape),
        _resident(w3.shape), _resident(b3.shape),
        _resident(w_head.shape), _resident(b_head.shape),
    ]
    out_spec = pl.BlockSpec((TB, fused_feats), lambda i: (i, 0))

    # Advisory cost estimate (helps XLA schedule the call inside a larger jit).
    f2, f1, f0 = w1.shape[1], w2.shape[1], w3.shape[1]
    flops = 2 * B_pad * (zd_dim * f2 + f2 * f1 + f1 * f0 + f0 * fused_feats)
    transcendentals = B_pad * fused_feats if prior == "Bern" else 0
    bytes_accessed = (z_in.size * 4
                      + sum(int(a.size) * 2 for a in (w1, w2, w3, w_head))
                      + sum(int(a.size) * 4 for a in (b1, b2, b3, b_head))
                      + B_pad * fused_feats * 4)

    kernel = functools.partial(_decoder_kernel, prior == "Bern", out_feats)

    fused = pl.pallas_call(
        kernel,
        out_shape=jax.ShapeDtypeStruct((B_pad, fused_feats), jnp.float32),
        grid=grid,
        in_specs=in_specs,
        out_specs=out_spec,
        compiler_params=pltpu.CompilerParams(
            dimension_semantics=("parallel",)),
        cost_estimate=pl.CostEstimate(
            flops=int(flops),
            transcendentals=int(transcendentals),
            bytes_accessed=int(bytes_accessed)),
    )(z_in, w1, b1, w2, b2, w3, b3, w_head, b_head)

    # Glue: drop batch padding, split fused heads, reshape to (B, C, H, W)
    # (same row-major semantics as torch.reshape).
    fused = fused[:B]
    x_pro = fused[:, :out_feats].reshape((B, *input_dim))
    log_sigma = fused[:, out_feats:].reshape((B, *input_dim))
    return x_pro, log_sigma


def init_params(key, zd_dim, features_dim, input_dim):
    """Deterministic synthetic parameters with the module's shapes.

    features_dim is given in reverse order [f0, f1, f2]; decod goes
    zd_dim -> f2 -> f1 -> f0, heads go f0 -> prod(input_dim).
    """
    f0, f1, f2 = features_dim
    out_feats = int(np.prod(input_dim))
    dims = [(zd_dim, f2), (f2, f1), (f1, f0), (f0, out_feats), (f0, out_feats)]
    names = ["1", "2", "3", "mu", "ls"]
    params = {}
    keys = jax.random.split(key, len(dims))
    for k, (din, dout), name in zip(keys, dims, names):
        kw, kb = jax.random.split(k)
        scale = 1.0 / np.sqrt(din)
        params["w" + name] = jax.random.uniform(
            kw, (din, dout), jnp.float32, -scale, scale)
        params["b" + name] = jax.random.uniform(
            kb, (1, dout), jnp.float32, -scale, scale)
    return params


if __name__ == "__main__":
    # Small, module-consistent shapes.
    B = 8
    zd_dim = 32
    features_dim = [128, 128, 256]   # [f0, f1, f2], reverse order as in the module
    input_dim = (3, 8, 8)            # reconstructed image C,H,W ; prod = 192

    key = jax.random.PRNGKey(0)
    kz, kp = jax.random.split(key)
    z = jax.random.normal(kz, (B, zd_dim), jnp.float32)
    params = init_params(kp, zd_dim, features_dim, input_dim)

    x_pro, log_sigma = linear_decoder_forward(z, params, prior="Bern",
                                              input_dim=input_dim)
    jax.block_until_ready((x_pro, log_sigma))

    assert x_pro.shape == (B, *input_dim)
    assert log_sigma.shape == (B, *input_dim)

    # Correctness check against a plain-JAX reference that uses the same
    # bf16-input / f32-accumulate matmul precision as the kernel.
    def bf16_linear(x, w, b):
        return jnp.dot(x.astype(jnp.bfloat16), w.astype(jnp.bfloat16),
                       preferred_element_type=jnp.float32) + b

    h = jnp.maximum(bf16_linear(z, params["w1"], params["b1"]), 0.0)
    h = jnp.maximum(bf16_linear(h, params["w2"], params["b2"]), 0.0)
    h = jnp.maximum(bf16_linear(h, params["w3"], params["b3"]), 0.0)
    mu_ref = jax.nn.sigmoid(bf16_linear(h, params["wmu"], params["bmu"]))
    ls_ref = bf16_linear(h, params["wls"], params["bls"])
    mu_ref = mu_ref.reshape(B, *input_dim)
    ls_ref = ls_ref.reshape(B, *input_dim)

    np.testing.assert_allclose(np.asarray(x_pro), np.asarray(mu_ref),
                               rtol=2e-3, atol=2e-3)
    np.testing.assert_allclose(np.asarray(log_sigma), np.asarray(ls_ref),
                               rtol=2e-3, atol=2e-3)

    print("KERNEL_OK")
</pallas_src>

<mosaic_0001>
module attributes {stable_mosaic.version = 11 : i64} {
  func.func @_decoder_kernel(%arg0: i32, %arg1: memref<8x32xf32, #tpu.memory_space<vmem>>, %arg2: memref<32x256xbf16, #tpu.memory_space<vmem>>, %arg3: memref<1x256xf32, #tpu.memory_space<vmem>>, %arg4: memref<256x128xbf16, #tpu.memory_space<vmem>>, %arg5: memref<1x128xf32, #tpu.memory_space<vmem>>, %arg6: memref<128x128xbf16, #tpu.memory_space<vmem>>, %arg7: memref<1x128xf32, #tpu.memory_space<vmem>>, %arg8: memref<128x384xbf16, #tpu.memory_space<vmem>>, %arg9: memref<1x384xf32, #tpu.memory_space<vmem>>, %arg10: memref<8x384xf32, #tpu.memory_space<vmem>>) attributes {dimension_semantics = [#tpu.dimension_semantics<parallel>], iteration_bounds = array<i64: 1>, scalar_prefetch = 0 : i64, scratch_operands = 0 : i64, tpu.core_type = #tpu.core_type<tc>, window_params = [{transform_indices = @transform_0, window_bounds = array<i64: 8, 32>}, {pipeline_mode = #tpu.pipeline_mode<synchronous>, transform_indices = @transform_1, window_bounds = array<i64: 32, 256>}, {pipeline_mode = #tpu.pipeline_mode<synchronous>, transform_indices = @transform_2, window_bounds = array<i64: 1, 256>}, {pipeline_mode = #tpu.pipeline_mode<synchronous>, transform_indices = @transform_3, window_bounds = array<i64: 256, 128>}, {pipeline_mode = #tpu.pipeline_mode<synchronous>, transform_indices = @transform_4, window_bounds = array<i64: 1, 128>}, {pipeline_mode = #tpu.pipeline_mode<synchronous>, transform_indices = @transform_5, window_bounds = array<i64: 128, 128>}, {pipeline_mode = #tpu.pipeline_mode<synchronous>, transform_indices = @transform_6, window_bounds = array<i64: 1, 128>}, {pipeline_mode = #tpu.pipeline_mode<synchronous>, transform_indices = @transform_7, window_bounds = array<i64: 128, 384>}, {pipeline_mode = #tpu.pipeline_mode<synchronous>, transform_indices = @transform_8, window_bounds = array<i64: 1, 384>}, {transform_indices = @transform_9, window_bounds = array<i64: 8, 384>}]} {
    %c0 = arith.constant 0 : index
    %c0_0 = arith.constant 0 : index
    %0 = vector.load %arg1[%c0, %c0_0] : memref<8x32xf32, #tpu.memory_space<vmem>>, vector<8x32xf32>
    %1 = arith.truncf %0 : vector<8x32xf32> to vector<8x32xbf16>
    %c0_1 = arith.constant 0 : index
    %c0_2 = arith.constant 0 : index
    %2 = vector.load %arg2[%c0_1, %c0_2] : memref<32x256xbf16, #tpu.memory_space<vmem>>, vector<32x256xbf16>
    %cst = arith.constant dense<0.000000e+00> : vector<8x256xf32>
    %3 = tpu.matmul %1, %2, %cst {dimension_numbers = #tpu.dot_dimension_numbers<[1], [0], [0], [1], [0, 0, 1, 1], [], []>} : vector<8x32xbf16>, vector<32x256xbf16>, vector<8x256xf32> -> vector<8x256xf32>
    %c0_3 = arith.constant 0 : index
    %c0_4 = arith.constant 0 : index
    %4 = vector.load %arg3[%c0_3, %c0_4] : memref<1x256xf32, #tpu.memory_space<vmem>>, vector<1x256xf32>
    %5 = vector.broadcast %4 : vector<1x256xf32> to vector<8x256xf32>
    %6 = arith.addf %3, %5 : vector<8x256xf32>
    %cst_5 = arith.constant 0.000000e+00 : f32
    %7 = vector.broadcast %cst_5 : f32 to vector<8x256xf32>
    %8 = arith.maximumf %6, %7 : vector<8x256xf32>
    %9 = arith.truncf %8 : vector<8x256xf32> to vector<8x256xbf16>
    %c0_6 = arith.constant 0 : index
    %c0_7 = arith.constant 0 : index
    %10 = vector.load %arg4[%c0_6, %c0_7] : memref<256x128xbf16, #tpu.memory_space<vmem>>, vector<256x128xbf16>
    %cst_8 = arith.constant dense<0.000000e+00> : vector<8x128xf32>
    %11 = tpu.matmul %9, %10, %cst_8 {dimension_numbers = #tpu.dot_dimension_numbers<[1], [0], [0], [1], [0, 0, 1, 1], [], []>} : vector<8x256xbf16>, vector<256x128xbf16>, vector<8x128xf32> -> vector<8x128xf32>
    %c0_9 = arith.constant 0 : index
    %c0_10 = arith.constant 0 : index
    %12 = vector.load %arg5[%c0_9, %c0_10] : memref<1x128xf32, #tpu.memory_space<vmem>>, vector<1x128xf32>
    %13 = vector.broadcast %12 : vector<1x128xf32> to vector<8x128xf32>
    %14 = arith.addf %11, %13 : vector<8x128xf32>
    %cst_11 = arith.constant 0.000000e+00 : f32
    %15 = vector.broadcast %cst_11 : f32 to vector<8x128xf32>
    %16 = arith.maximumf %14, %15 : vector<8x128xf32>
    %17 = arith.truncf %16 : vector<8x128xf32> to vector<8x128xbf16>
    %c0_12 = arith.constant 0 : index
    %c0_13 = arith.constant 0 : index
    %18 = vector.load %arg6[%c0_12, %c0_13] : memref<128x128xbf16, #tpu.memory_space<vmem>>, vector<128x128xbf16>
    %cst_14 = arith.constant dense<0.000000e+00> : vector<8x128xf32>
    %19 = tpu.matmul %17, %18, %cst_14 {dimension_numbers = #tpu.dot_dimension_numbers<[1], [0], [0], [1], [0, 0, 1, 1], [], []>} : vector<8x128xbf16>, vector<128x128xbf16>, vector<8x128xf32> -> vector<8x128xf32>
    %c0_15 = arith.constant 0 : index
    %c0_16 = arith.constant 0 : index
    %20 = vector.load %arg7[%c0_15, %c0_16] : memref<1x128xf32, #tpu.memory_space<vmem>>, vector<1x128xf32>
    %21 = vector.broadcast %20 : vector<1x128xf32> to vector<8x128xf32>
    %22 = arith.addf %19, %21 : vector<8x128xf32>
    %cst_17 = arith.constant 0.000000e+00 : f32
    %23 = vector.broadcast %cst_17 : f32 to vector<8x128xf32>
    %24 = arith.maximumf %22, %23 : vector<8x128xf32>
    %25 = arith.truncf %24 : vector<8x128xf32> to vector<8x128xbf16>
    %c0_18 = arith.constant 0 : index
    %c0_19 = arith.constant 0 : index
    %26 = vector.load %arg8[%c0_18, %c0_19] : memref<128x384xbf16, #tpu.memory_space<vmem>>, vector<128x384xbf16>
    %cst_20 = arith.constant dense<0.000000e+00> : vector<8x384xf32>
    %27 = tpu.matmul %25, %26, %cst_20 {dimension_numbers = #tpu.dot_dimension_numbers<[1], [0], [0], [1], [0, 0, 1, 1], [], []>} : vector<8x128xbf16>, vector<128x384xbf16>, vector<8x384xf32> -> vector<8x384xf32>
    %c0_21 = arith.constant 0 : index
    %c0_22 = arith.constant 0 : index
    %28 = vector.load %arg9[%c0_21, %c0_22] : memref<1x384xf32, #tpu.memory_space<vmem>>, vector<1x384xf32>
    %29 = vector.broadcast %28 : vector<1x384xf32> to vector<8x384xf32>
    %30 = arith.addf %27, %29 : vector<8x384xf32>
    %31 = tpu.iota {dimensions = array<i32: 1>} : vector<8x384xi32>
    %c192_i32 = arith.constant 192 : i32
    %32 = vector.broadcast %c192_i32 : i32 to vector<8x384xi32>
    %33 = arith.cmpi slt, %31, %32 : vector<8x384xi32>
    %34 = arith.negf %30 : vector<8x384xf32>
    %35 = math.exp %34 : vector<8x384xf32>
    %cst_23 = arith.constant 1.000000e+00 : f32
    %36 = vector.broadcast %cst_23 : f32 to vector<8x384xf32>
    %37 = arith.addf %36, %35 : vector<8x384xf32>
    %38 = arith.divf %36, %37 : vector<8x384xf32>
    %39 = arith.select %33, %38, %30 : vector<8x384xi1>, vector<8x384xf32>
    %c0_24 = arith.constant 0 : index
    %c0_25 = arith.constant 0 : index
    %40 = vector.load %arg10[%c0_24, %c0_25] : memref<8x384xf32, #tpu.memory_space<vmem>>, vector<8x384xf32>
    tpu.vector_store %arg10[%c0_24, %c0_25], %39 {strides = array<i32>} : memref<8x384xf32, #tpu.memory_space<vmem>>, vector<8x384xf32>,
    return
  }
  func.func @transform_0(%arg0: i32) -> (i32, i32) {
    %c0_i32 = arith.constant 0 : i32
    %c0_i32_0 = arith.constant 0 : i32
    return %arg0, %c0_i32 : i32, i32
  }
  func.func @transform_1(%arg0: i32) -> (i32, i32) {
    %c0_i32 = arith.constant 0 : i32
    %c0_i32_0 = arith.constant 0 : i32
    %c0_i32_1 = arith.constant 0 : i32
    return %c0_i32, %c0_i32_0 : i32, i32
  }
  func.func @transform_2(%arg0: i32) -> (i32, i32) {
    %c0_i32 = arith.constant 0 : i32
    %c0_i32_0 = arith.constant 0 : i32
    %c0_i32_1 = arith.constant 0 : i32
    return %c0_i32, %c0_i32_0 : i32, i32
  }
  func.func @transform_3(%arg0: i32) -> (i32, i32) {
    %c0_i32 = arith.constant 0 : i32
    %c0_i32_0 = arith.constant 0 : i32
    %c0_i32_1 = arith.constant 0 : i32
    return %c0_i32, %c0_i32_0 : i32, i32
  }
  func.func @transform_4(%arg0: i32) -> (i32, i32) {
    %c0_i32 = arith.constant 0 : i32
    %c0_i32_0 = arith.constant 0 : i32
    %c0_i32_1 = arith.constant 0 : i32
    return %c0_i32, %c0_i32_0 : i32, i32
  }
  func.func @transform_5(%arg0: i32) -> (i32, i32) {
    %c0_i32 = arith.constant 0 : i32
    %c0_i32_0 = arith.constant 0 : i32
    %c0_i32_1 = arith.constant 0 : i32
    return %c0_i32, %c0_i32_0 : i32, i32
  }
  func.func @transform_6(%arg0: i32) -> (i32, i32) {
    %c0_i32 = arith.constant 0 : i32
    %c0_i32_0 = arith.constant 0 : i32
    %c0_i32_1 = arith.constant 0 : i32
    return %c0_i32, %c0_i32_0 : i32, i32
  }
  func.func @transform_7(%arg0: i32) -> (i32, i32) {
    %c0_i32 = arith.constant 0 : i32
    %c0_i32_0 = arith.constant 0 : i32
    %c0_i32_1 = arith.constant 0 : i32
    return %c0_i32, %c0_i32_0 : i32, i32
  }
  func.func @transform_8(%arg0: i32) -> (i32, i32) {
    %c0_i32 = arith.constant 0 : i32
    %c0_i32_0 = arith.constant 0 : i32
    %c0_i32_1 = arith.constant 0 : i32
    return %c0_i32, %c0_i32_0 : i32, i32
  }
  func.func @transform_9(%arg0: i32) -> (i32, i32) {
    %c0_i32 = arith.constant 0 : i32
    %c0_i32_0 = arith.constant 0 : i32
    return %arg0, %c0_i32 : i32, i32
  }
}

</mosaic_0001>

<llo_original>
// kernel: tpu_custom_call.1
$region0: #{tpu_custom_call.1}
  #allocation0 [shape = 'u32[]', space=smem, size = 0x4, offset = 0x4, fixed_abs, tag = 'smem constant byte address 0x4 - core index']
  #allocation1 [shape = 'u32[144,128]{1,0:T(1,128)}', space=vmem, size = 0x12000, scoped, tag = 'internal scratch']
  %s0 = inlined_call_operand.hbm [shape: f32[8,32], index: 0, kind: input, shape index: {}]
  %s1 = inlined_call_operand.hbm [shape: bf16[32,256], index: 1, kind: input, shape index: {}]
  %s2 = inlined_call_operand.vmem [shape: f32[1,256], index: 2, kind: input, shape index: {}]
  %s3 = inlined_call_operand.hbm [shape: bf16[256,128], index: 3, kind: input, shape index: {}]
  %s4 = inlined_call_operand.vmem [shape: f32[1,128], index: 4, kind: input, shape index: {}]
  %s5 = inlined_call_operand.hbm [shape: bf16[128,128], index: 5, kind: input, shape index: {}]
  %s6 = inlined_call_operand.vmem [shape: f32[1,128], index: 6, kind: input, shape index: {}]
  %s7 = inlined_call_operand.hbm [shape: bf16[128,384], index: 7, kind: input, shape index: {}]
  %s8 = inlined_call_operand.vmem [shape: f32[1,384], index: 8, kind: input, shape index: {}]
  %s9 = inlined_call_operand.hbm [shape: f32[8,384], index: 9, kind: output, shape index: {}]
  %s10 = sld [smem:[#allocation0]]
  $region66: #{tpu_custom_call.1} parent=0
    _
  %s12 = ssub.s32 1, %s10
  %s13 = scalar_select 0, %s12, %s10
  $region1: #{tpu_custom_call.1} parent=0
    #allocation2 [shape = 'u8[4096]{0}', space=vmem, size = 0x1000, scoped, tag = 'input window, operand 0, single buffered']
    #allocation3 [shape = 's32[1]{0}', space=sflag, size = 0x4, scoped, tag = 'scoped memory for tpu_custom_call.1']
    #allocation4 [shape = 's32[1]{0}', space=sflag, size = 0x4, scoped, tag = 'scoped memory for tpu_custom_call.1']
    #allocation5 [shape = 'u8[16384]{0}', space=vmem, size = 0x4000, scoped, tag = 'input window, operand 1, single buffered']
    #allocation6 [shape = 's32[1]{0}', space=sflag, size = 0x4, scoped, tag = 'scoped memory for tpu_custom_call.1']
    #allocation7 [shape = 'u8[65536]{0}', space=vmem, size = 0x10000, scoped, tag = 'input window, operand 3, single buffered']
    #allocation8 [shape = 'u8[32768]{0}', space=vmem, size = 0x8000, scoped, tag = 'input window, operand 5, single buffered']
    #allocation9 [shape = 's32[1]{0}', space=sflag, size = 0x4, scoped, tag = 'scoped memory for tpu_custom_call.1']
    #allocation10 [shape = 'u8[98304]{0}', space=vmem, size = 0x18000, scoped, tag = 'input window, operand 7, single buffered']
    #allocation11 [shape = 'u8[12288]{0}', space=vmem, size = 0x3000, scoped, tag = 'output window, operand 0, single buffered']
    %14 = vsyncpa [#allocation3], 0
    %15 = vsyncpa [#allocation6], 0
    %16 = vsyncpa [#allocation9], 0
    %17 = vsyncpa [#allocation4], 0
    // Predicated region
    $region2: #{tpu_custom_call.1} parent=1 // pred_check
      _
    $region3: #{tpu_custom_call.1} parent=1 // pred_check_branch
      %19 = sbr.rel (0) target = $region5
    $region4: #{tpu_custom_call.1} parent=1 // pred_region
      %s21 = ssub.s32 128, 128
      %22 = vsyncadd [#allocation3], %s21
      %s24 = sshll.u32 [#allocation2], 4
      %s25 = int_to_ptr.vmem [resolvable:$true] %s24
      %27 = dma.hbm_to_vmem [thread:$0]  %s0, 128, %s25, [#allocation3]
    $region5: #{tpu_custom_call.1} parent=1 // pred_fallthru
      _
    // Predicated region
    $region6: #{tpu_custom_call.1} parent=1 // pred_check
      _
    $region7: #{tpu_custom_call.1} parent=1 // pred_check_branch
      %29 = sbr.rel (0) target = $region9
    $region8: #{tpu_custom_call.1} parent=1 // pred_region
      %s31 = ssub.s32 512, 512
      %32 = vsyncadd [#allocation6], %s31
      %s33 = sshll.u32 [#allocation5], 4
      %s34 = int_to_ptr.vmem [resolvable:$true] %s33
      %39 = dma.hbm_to_vmem [thread:$0]  %s1, 512, %s34, [#allocation6], 128, 128, 8
    $region9: #{tpu_custom_call.1} parent=1 // pred_fallthru
      _
    // Predicated region
    $region10: #{tpu_custom_call.1} parent=1 // pred_check
      _
    $region11: #{tpu_custom_call.1} parent=1 // pred_check_branch
      %41 = sbr.rel (0) target = $region13
    $region12: #{tpu_custom_call.1} parent=1 // pred_region
      _
    $region13: #{tpu_custom_call.1} parent=1 // pred_fallthru
      _
    // Predicated region
    $region14: #{tpu_custom_call.1} parent=1 // pred_check
      _
    $region15: #{tpu_custom_call.1} parent=1 // pred_check_branch
      %43 = sbr.rel (0) target = $region17
    $region16: #{tpu_custom_call.1} parent=1 // pred_region
      %s45 = ssub.s32 2048, 2048
      %46 = vsyncadd [#allocation6], %s45
      %s47 = sshll.u32 [#allocation7], 4
      %s48 = int_to_ptr.vmem [resolvable:$true] %s47
      %53 = dma.hbm_to_vmem [thread:$0]  %s3, 2048, %s48, [#allocation6], 64, 64, 4
    $region17: #{tpu_custom_call.1} parent=1 // pred_fallthru
      _
    // Predicated region
    $region18: #{tpu_custom_call.1} parent=1 // pred_check
      _
    $region19: #{tpu_custom_call.1} parent=1 // pred_check_branch
      %55 = sbr.rel (0) target = $region21
    $region20: #{tpu_custom_call.1} parent=1 // pred_region
      _
    $region21: #{tpu_custom_call.1} parent=1 // pred_fallthru
      _
    // Predicated region
    $region22: #{tpu_custom_call.1} parent=1 // pred_check
      _
    $region23: #{tpu_custom_call.1} parent=1 // pred_check_branch
      %57 = sbr.rel (0) target = $region25
    $region24: #{tpu_custom_call.1} parent=1 // pred_region
      %s59 = ssub.s32 1024, 1024
      %60 = vsyncadd [#allocation9], %s59
      %s61 = sshll.u32 [#allocation8], 4
      %s62 = int_to_ptr.vmem [resolvable:$true] %s61
      %67 = dma.hbm_to_vmem [thread:$0]  %s5, 1024, %s62, [#allocation9], 64, 64, 4
    $region25: #{tpu_custom_call.1} parent=1 // pred_fallthru
      _
    // Predicated region
    $region26: #{tpu_custom_call.1} parent=1 // pred_check
      _
    $region27: #{tpu_custom_call.1} parent=1 // pred_check_branch
      %69 = sbr.rel (0) target = $region29
    $region28: #{tpu_custom_call.1} parent=1 // pred_region
      _
    $region29: #{tpu_custom_call.1} parent=1 // pred_fallthru
      _
    // Predicated region
    $region30: #{tpu_custom_call.1} parent=1 // pred_check
      _
    $region31: #{tpu_custom_call.1} parent=1 // pred_check_branch
      %71 = sbr.rel (0) target = $region33
    $region32: #{tpu_custom_call.1} parent=1 // pred_region
      %s73 = ssub.s32 3072, 3072
      %74 = vsyncadd [#allocation9], %s73
      %s75 = sshll.u32 [#allocation10], 4
      %s76 = int_to_ptr.vmem [resolvable:$true] %s75
      %81 = dma.hbm_to_vmem [thread:$0]  %s7, 3072, %s76, [#allocation9], 192, 192, 12
    $region33: #{tpu_custom_call.1} parent=1 // pred_fallthru
      _
    // Predicated region
    $region34: #{tpu_custom_call.1} parent=1 // pred_check
      _
    $region35: #{tpu_custom_call.1} parent=1 // pred_check_branch
      %83 = sbr.rel (0) target = $region37
    $region36: #{tpu_custom_call.1} parent=1 // pred_region
      _
    $region37: #{tpu_custom_call.1} parent=1 // pred_fallthru
      _
    // Predicated region
    $region38: #{tpu_custom_call.1} parent=1 // pred_check
      _
    $region39: #{tpu_custom_call.1} parent=1 // pred_check_branch
      %85 = sbr.rel (0) target = $region41
    $region40: #{tpu_custom_call.1} parent=1 // pred_region
      %86 = dma.done [#allocation3], 128
    $region41: #{tpu_custom_call.1} parent=1 // pred_fallthru
      _
    // Predicated region
    $region42: #{tpu_custom_call.1} parent=1 // pred_check
      _
    $region43: #{tpu_custom_call.1} parent=1 // pred_check_branch
      %88 = sbr.rel (0) target = $region45
    $region44: #{tpu_custom_call.1} parent=1 // pred_region
      %89 = dma.done [#allocation6], 512
    $region45: #{tpu_custom_call.1} parent=1 // pred_fallthru
      _
    // Predicated region
    $region46: #{tpu_custom_call.1} parent=1 // pred_check
      _
    $region47: #{tpu_custom_call.1} parent=1 // pred_check_branch
      %91 = sbr.rel (0) target = $region49
    $region48: #{tpu_custom_call.1} parent=1 // pred_region
      %92 = dma.done [#allocation6], 2048
    $region49: #{tpu_custom_call.1} parent=1 // pred_fallthru
      _
    // Predicated region
    $region50: #{tpu_custom_call.1} parent=1 // pred_check
      _
    $region51: #{tpu_custom_call.1} parent=1 // pred_check_branch
      %94 = sbr.rel (0) target = $region53
    $region52: #{tpu_custom_call.1} parent=1 // pred_region
      %95 = dma.done [#allocation9], 1024
    $region53: #{tpu_custom_call.1} parent=1 // pred_fallthru
      _
    // Predicated region
    $region54: #{tpu_custom_call.1} parent=1 // pred_check
      _
    $region55: #{tpu_custom_call.1} parent=1 // pred_check_branch
      %97 = sbr.rel (0) target = $region57
    $region56: #{tpu_custom_call.1} parent=1 // pred_region
      %98 = dma.done [#allocation9], 3072
    $region57: #{tpu_custom_call.1} parent=1 // pred_fallthru
      _
    %v100 = vld [vmem:[#allocation2] sm:$0xff]
    %v101 = vpack.c.bf16 %v100, %v100
    %v102 = vld [vmem:[#allocation5] sm:$0xff]
    %v103 = vld [vmem:[#allocation5 + $0x8] sm:$0xff]
    %v104 = vld [vmem:[#allocation5 + $0x10] sm:$0xff]
    %v105 = vld [vmem:[#allocation5 + $0x18] sm:$0xff]
    %v106 = vld [vmem:[%s2] sm:$0x3]
    %v108 = vlaneseq
    %v109 = vshrl.u32 %v108, 7
    %v110 = vsub.s32 0, %v109
    %v111 = vrot.slane %v106, %v110
    %v112 = vlaneseq
    %v113 = vshrl.u32 %v112, 7
    %v114 = vsub.s32 1, %v113
    %v115 = vrot.slane %v106, %v114
    %v122 = vunpack.c.l.b16 %v102
    %v123 = vunpack.c.h.b16 %v102
    %v124 = vunpack.c.l.b16 %v103
    %v125 = vunpack.c.h.b16 %v103
    %v126 = vunpack.c.l.b16 %v104
    %v127 = vunpack.c.h.b16 %v104
    %v128 = vunpack.c.l.b16 %v105
    %v129 = vunpack.c.h.b16 %v105
    %v130 = vpack.c.b16 %v124, %v122
    %v131 = vpack.c.b16 %v125, %v123
    %v132 = vpack.c.b16 %v128, %v126
    %v133 = vpack.c.b16 %v129, %v127
    %vm138 = vcmask 261120
    %v140 = vsel %vm138, %v101, 0
    %142 = vmatprep.subr.bf16.mxu0 %v131
    %143 = vmatpush1.bf16.msra.mxu0 %v130
    %144 = vmatprep.subr.bf16.mxu0 %v133
    %145 = vmatpush1.bf16.msra.mxu0 %v132
    %146 = vmatprep.subr.bf16.mxu0 0
    %147 = vmatpush1.bf16.msra.mxu0 0
    %148 = vmatprep.subr.bf16.mxu0 0
    %149 = vmatpush1.bf16.msra.mxu0 0
    %150 = vmatprep.subr.bf16.mxu0 0
    %151 = vmatpush1.bf16.msra.mxu0 0
    %152 = vmatprep.subr.bf16.mxu0 0
    %153 = vmatpush1.bf16.msra.mxu0 0
    %154 = vmatprep.subr.bf16.mxu0 0
    %155 = vmatpush1.bf16.msra.mxu0 0
    %156 = vmatprep.subr.bf16.mxu0 0
    %157 = vmatpush1.bf16.msra.mxu0 0
    %158 = vmatprep.subr.bf16.mxu0 0
    %159 = vmatpush1.bf16.msra.mxu0 0
    %160 = vmatprep.subr.bf16.mxu0 0
    %161 = vmatpush1.bf16.msra.mxu0 0
    %162 = vmatprep.subr.bf16.mxu0 0
    %163 = vmatpush1.bf16.msra.mxu0 0
    %164 = vmatprep.subr.bf16.mxu0 0
    %165 = vmatpush1.bf16.msra.mxu0 0
    %166 = vmatprep.subr.bf16.mxu0 0
    %167 = vmatpush1.bf16.msra.mxu0 0
    %168 = vmatprep.subr.bf16.mxu0 0
    %169 = vmatpush1.bf16.msra.mxu0 0
    %170 = vmatprep.subr.bf16.mxu0 0
    %171 = vmatpush1.bf16.msra.mxu0 0
    %172 = vmatprep.subr.bf16.mxu0 0
    %173 = vmatpush1.bf16.msra.mxu0 0
    %174 = vmatprep.mubr.bf16.mxu0 0
    %175 = vmatmul.mubr.bf16.gmra.mrb[0].mxu0 %v140
    %v176 = vpop.f32.mrb[0].mxu0
    %v177 = vadd.f32 %v111, %v176
    %v178 = vpop.f32.mrb[0].mxu0
    %v179 = vadd.f32 %v115, %v178
    %v180 = vpop.f32.mrb[0].mxu0
    %v181 = vpop.f32.mrb[0].mxu0
    %182 = vdwg.mxu0
    %v183 = vmax.f32 %v177, 0.0
    %v184 = vmax.f32 %v179, 0.0
    %v185 = vpack.c.bf16 %v183, %v183
    %v186 = vpack.c.bf16 %v184, %v184
    %v187 = vld [vmem:[#allocation7] sm:$0xf]
    %v188 = vld [vmem:[#allocation7 + $0x4] sm:$0xf]
    %v189 = vld [vmem:[#allocation7 + $0x8] sm:$0xf]
    %v190 = vld [vmem:[#allocation7 + $0xc] sm:$0xf]
    %v191 = vld [vmem:[#allocation7 + $0x10] sm:$0xf]
    %v192 = vld [vmem:[#allocation7 + $0x14] sm:$0xf]
    %v193 = vld [vmem:[#allocation7 + $0x18] sm:$0xf]
    %v194 = vld [vmem:[#allocation7 + $0x1c] sm:$0xf]
    %v195 = vld [vmem:[#allocation7 + $0x20] sm:$0xf]
    %v196 = vld [vmem:[#allocation7 + $0x24] sm:$0xf]
    %v197 = vld [vmem:[#allocation7 + $0x28] sm:$0xf]
    %v198 = vld [vmem:[#allocation7 + $0x2c] sm:$0xf]
    %v199 = vld [vmem:[#allocation7 + $0x30] sm:$0xf]
    %v200 = vld [vmem:[#allocation7 + $0x34] sm:$0xf]
    %v201 = vld [vmem:[#allocation7 + $0x38] sm:$0xf]
    %v202 = vld [vmem:[#allocation7 + $0x3c] sm:$0xf]
    %v203 = vld [vmem:[#allocation7 + $0x40] sm:$0xf]
    %v204 = vld [vmem:[#allocation7 + $0x44] sm:$0xf]
    %v205 = vld [vmem:[#allocation7 + $0x48] sm:$0xf]
    %v206 = vld [vmem:[#allocation7 + $0x4c] sm:$0xf]
    %v207 = vld [vmem:[#allocation7 + $0x50] sm:$0xf]
    %v208 = vld [vmem:[#allocation7 + $0x54] sm:$0xf]
    %v209 = vld [vmem:[#allocation7 + $0x58] sm:$0xf]
    %v210 = vld [vmem:[#allocation7 + $0x5c] sm:$0xf]
    %v211 = vld [vmem:[#allocation7 + $0x60] sm:$0xf]
    %v212 = vld [vmem:[#allocation7 + $0x64] sm:$0xf]
    %v213 = vld [vmem:[#allocation7 + $0x68] sm:$0xf]
    %v214 = vld [vmem:[#allocation7 + $0x6c] sm:$0xf]
    %v215 = vld [vmem:[#allocation7 + $0x70] sm:$0xf]
    %v216 = vld [vmem:[#allocation7 + $0x74] sm:$0xf]
    %v217 = vld [vmem:[#allocation7 + $0x78] sm:$0xf]
    %v218 = vld [vmem:[#allocation7 + $0x7c] sm:$0xf]
    %v219 = vld [vmem:[%s4] sm:$0x1]
    %v221 = vlaneseq
    %v222 = vshrl.u32 %v221, 7
    %v223 = vsub.s32 0, %v222
    %v224 = vrot.slane %v219, %v223
    %v258 = vunpack.c.l.b16 %v187
    %v259 = vunpack.c.l.b16 %v188
    %v260 = vunpack.c.l.b16 %v189
    %v261 = vunpack.c.l.b16 %v190
    %v262 = vunpack.c.l.b16 %v191
    %v263 = vunpack.c.l.b16 %v192
    %v264 = vunpack.c.l.b16 %v193
    %v265 = vunpack.c.l.b16 %v194
    %v266 = vunpack.c.l.b16 %v195
    %v267 = vunpack.c.l.b16 %v196
    %v268 = vunpack.c.l.b16 %v197
    %v269 = vunpack.c.l.b16 %v198
    %v270 = vunpack.c.l.b16 %v199
    %v271 = vunpack.c.l.b16 %v200
    %v272 = vunpack.c.l.b16 %v201
    %v273 = vunpack.c.l.b16 %v202
    %v274 = vunpack.c.l.b16 %v203
    %v275 = vunpack.c.l.b16 %v204
    %v276 = vunpack.c.l.b16 %v205
    %v277 = vunpack.c.l.b16 %v206
    %v278 = vunpack.c.l.b16 %v207
    %v279 = vunpack.c.l.b16 %v208
    %v280 = vunpack.c.l.b16 %v209
    %v281 = vunpack.c.l.b16 %v210
    %v282 = vunpack.c.l.b16 %v211
    %v283 = vunpack.c.l.b16 %v212
    %v284 = vunpack.c.l.b16 %v213
    %v285 = vunpack.c.l.b16 %v214
    %v286 = vunpack.c.l.b16 %v215
    %v287 = vunpack.c.l.b16 %v216
    %v288 = vunpack.c.l.b16 %v217
    %v289 = vunpack.c.l.b16 %v218
    %v290 = vpack.c.b16 %v259, %v258
    %v291 = vpack.c.b16 %v261, %v260
    %v292 = vpack.c.b16 %v263, %v262
    %v293 = vpack.c.b16 %v265, %v264
    %v294 = vpack.c.b16 %v267, %v266
    %v295 = vpack.c.b16 %v269, %v268
    %v296 = vpack.c.b16 %v271, %v270
    %v297 = vpack.c.b16 %v273, %v272
    %v298 = vpack.c.b16 %v275, %v274
    %v299 = vpack.c.b16 %v277, %v276
    %v300 = vpack.c.b16 %v279, %v278
    %v301 = vpack.c.b16 %v281, %v280
    %v302 = vpack.c.b16 %v283, %v282
    %v303 = vpack.c.b16 %v285, %v284
    %v304 = vpack.c.b16 %v287, %v286
    %v305 = vpack.c.b16 %v289, %v288
    %322 = vmatprep.subr.bf16.mxu0 0
    %323 = vmatpush1.bf16.msra.mxu0 %v290
    %324 = vmatprep.subr.bf16.mxu0 0
    %325 = vmatpush1.bf16.msra.mxu0 %v291
    %326 = vmatprep.subr.bf16.mxu0 0
    %327 = vmatpush1.bf16.msra.mxu0 %v292
    %328 = vmatprep.subr.bf16.mxu0 0
    %329 = vmatpush1.bf16.msra.mxu0 %v293
    %330 = vmatprep.subr.bf16.mxu0 0
    %331 = vmatpush1.bf16.msra.mxu0 %v294
    %332 = vmatprep.subr.bf16.mxu0 0
    %333 = vmatpush1.bf16.msra.mxu0 %v295
    %334 = vmatprep.subr.bf16.mxu0 0
    %335 = vmatpush1.bf16.msra.mxu0 %v296
    %336 = vmatprep.subr.bf16.mxu0 0
    %337 = vmatpush1.bf16.msra.mxu0 %v297
    %338 = vmatprep.subr.bf16.mxu0 0
    %339 = vmatpush1.bf16.msra.mxu0 %v298
    %340 = vmatprep.subr.bf16.mxu0 0
    %341 = vmatpush1.bf16.msra.mxu0 %v299
    %342 = vmatprep.subr.bf16.mxu0 0
    %343 = vmatpush1.bf16.msra.mxu0 %v300
    %344 = vmatprep.subr.bf16.mxu0 0
    %345 = vmatpush1.bf16.msra.mxu0 %v301
    %346 = vmatprep.subr.bf16.mxu0 0
    %347 = vmatpush1.bf16.msra.mxu0 %v302
    %348 = vmatprep.subr.bf16.mxu0 0
    %349 = vmatpush1.bf16.msra.mxu0 %v303
    %350 = vmatprep.subr.bf16.mxu0 0
    %351 = vmatpush1.bf16.msra.mxu0 %v304
    %352 = vmatprep.subr.bf16.mxu0 0
    %353 = vmatpush1.bf16.msra.mxu0 %v305
    %354 = vmatprep.mubr.bf16.mxu0 %v186
    %355 = vmatmul.mubr.bf16.gmra.mrb[0].mxu0 %v185
    %v356 = vpop.f32.mrb[0].mxu0
    %v357 = vadd.f32 %v224, %v356
    %v358 = vpop.f32.mrb[0].mxu0
    %v359 = vpop.f32.mrb[0].mxu0
    %v360 = vpop.f32.mrb[0].mxu0
    %361 = vdwg.mxu0
    %v362 = vmax.f32 %v357, 0.0
    %v363 = vpack.c.bf16 %v362, %v362
    %v364 = vld [vmem:[#allocation8] sm:$0xf]
    %v365 = vld [vmem:[#allocation8 + $0x4] sm:$0xf]
    %v366 = vld [vmem:[#allocation8 + $0x8] sm:$0xf]
    %v367 = vld [vmem:[#allocation8 + $0xc] sm:$0xf]
    %v368 = vld [vmem:[#allocation8 + $0x10] sm:$0xf]
    %v369 = vld [vmem:[#allocation8 + $0x14] sm:$0xf]
    %v370 = vld [vmem:[#allocation8 + $0x18] sm:$0xf]
    %v371 = vld [vmem:[#allocation8 + $0x1c] sm:$0xf]
    %v372 = vld [vmem:[#allocation8 + $0x20] sm:$0xf]
    %v373 = vld [vmem:[#allocation8 + $0x24] sm:$0xf]
    %v374 = vld [vmem:[#allocation8 + $0x28] sm:$0xf]
    %v375 = vld [vmem:[#allocation8 + $0x2c] sm:$0xf]
    %v376 = vld [vmem:[#allocation8 + $0x30] sm:$0xf]
    %v377 = vld [vmem:[#allocation8 + $0x34] sm:$0xf]
    %v378 = vld [vmem:[#allocation8 + $0x38] sm:$0xf]
    %v379 = vld [vmem:[#allocation8 + $0x3c] sm:$0xf]
    %v380 = vld [vmem:[%s6] sm:$0x1]
    %v382 = vlaneseq
    %v383 = vshrl.u32 %v382, 7
    %v384 = vsub.s32 0, %v383
    %v385 = vrot.slane %v380, %v384
    %v403 = vunpack.c.l.b16 %v364
    %v404 = vunpack.c.l.b16 %v365
    %v405 = vunpack.c.l.b16 %v366
    %v406 = vunpack.c.l.b16 %v367
    %v407 = vunpack.c.l.b16 %v368
    %v408 = vunpack.c.l.b16 %v369
    %v409 = vunpack.c.l.b16 %v370
    %v410 = vunpack.c.l.b16 %v371
    %v411 = vunpack.c.l.b16 %v372
    %v412 = vunpack.c.l.b16 %v373
    %v413 = vunpack.c.l.b16 %v374
    %v414 = vunpack.c.l.b16 %v375
    %v415 = vunpack.c.l.b16 %v376
    %v416 = vunpack.c.l.b16 %v377
    %v417 = vunpack.c.l.b16 %v378
    %v418 = vunpack.c.l.b16 %v379
    %v419 = vpack.c.b16 %v404, %v403
    %v420 = vpack.c.b16 %v406, %v405
    %v421 = vpack.c.b16 %v408, %v407
    %v422 = vpack.c.b16 %v410, %v409
    %v423 = vpack.c.b16 %v412, %v411
    %v424 = vpack.c.b16 %v414, %v413
    %v425 = vpack.c.b16 %v416, %v415
    %v426 = vpack.c.b16 %v418, %v417
    %435 = vmatprep.subr.bf16.mxu0 0
    %436 = vmatpush1.bf16.msra.mxu0 %v419
    %437 = vmatprep.subr.bf16.mxu0 0
    %438 = vmatpush1.bf16.msra.mxu0 %v420
    %439 = vmatprep.subr.bf16.mxu0 0
    %440 = vmatpush1.bf16.msra.mxu0 %v421
    %441 = vmatprep.subr.bf16.mxu0 0
    %442 = vmatpush1.bf16.msra.mxu0 %v422
    %443 = vmatprep.subr.bf16.mxu0 0
    %444 = vmatpush1.bf16.msra.mxu0 %v423
    %445 = vmatprep.subr.bf16.mxu0 0
    %446 = vmatpush1.bf16.msra.mxu0 %v424
    %447 = vmatprep.subr.bf16.mxu0 0
    %448 = vmatpush1.bf16.msra.mxu0 %v425
    %449 = vmatprep.subr.bf16.mxu0 0
    %450 = vmatpush1.bf16.msra.mxu0 %v426
    %451 = vmatprep.subr.bf16.mxu0 0
    %452 = vmatpush1.bf16.msra.mxu0 0
    %453 = vmatprep.subr.bf16.mxu0 0
    %454 = vmatpush1.bf16.msra.mxu0 0
    %455 = vmatprep.subr.bf16.mxu0 0
    %456 = vmatpush1.bf16.msra.mxu0 0
    %457 = vmatprep.subr.bf16.mxu0 0
    %458 = vmatpush1.bf16.msra.mxu0 0
    %459 = vmatprep.subr.bf16.mxu0 0
    %460 = vmatpush1.bf16.msra.mxu0 0
    %461 = vmatprep.subr.bf16.mxu0 0
    %462 = vmatpush1.bf16.msra.mxu0 0
    %463 = vmatprep.subr.bf16.mxu0 0
    %464 = vmatpush1.bf16.msra.mxu0 0
    %465 = vmatprep.subr.bf16.mxu0 0
    %466 = vmatpush1.bf16.msra.mxu0 0
    %467 = vmatprep.mubr.bf16.mxu0 0
    %468 = vmatmul.mubr.bf16.gmra.mrb[0].mxu0 %v363
    %v469 = vpop.f32.mrb[0].mxu0
    %v470 = vadd.f32 %v385, %v469
    %v471 = vpop.f32.mrb[0].mxu0
    %v472 = vpop.f32.mrb[0].mxu0
    %v473 = vpop.f32.mrb[0].mxu0
    %474 = vdwg.mxu0
    %v475 = vmax.f32 %v470, 0.0
    %v476 = vpack.c.bf16 %v475, %v475
    %v477 = vld [vmem:[#allocation10] sm:$0xff]
    %v478 = vld [vmem:[#allocation10 + $0x8] sm:$0xf]
    %v479 = vld [vmem:[#allocation10 + $0xc] sm:$0xff]
    %v480 = vld [vmem:[#allocation10 + $0x14] sm:$0xf]
    %v481 = vld [vmem:[#allocation10 + $0x18] sm:$0xff]
    %v482 = vld [vmem:[#allocation10 + $0x20] sm:$0xf]
    %v483 = vld [vmem:[#allocation10 + $0x24] sm:$0xff]
    %v484 = vld [vmem:[#allocation10 + $0x2c] sm:$0xf]
    %v485 = vld [vmem:[#allocation10 + $0x30] sm:$0xff]
    %v486 = vld [vmem:[#allocation10 + $0x38] sm:$0xf]
    %v487 = vld [vmem:[#allocation10 + $0x3c] sm:$0xff]
    %v488 = vld [vmem:[#allocation10 + $0x44] sm:$0xf]
    %v489 = vld [vmem:[#allocation10 + $0x48] sm:$0xff]
    %v490 = vld [vmem:[#allocation10 + $0x50] sm:$0xf]
    %v491 = vld [vmem:[#allocation10 + $0x54] sm:$0xff]
    %v492 = vld [vmem:[#allocation10 + $0x5c] sm:$0xf]
    %v493 = vld [vmem:[#allocation10 + $0x60] sm:$0xff]
    %v494 = vld [vmem:[#allocation10 + $0x68] sm:$0xf]
    %v495 = vld [vmem:[#allocation10 + $0x6c] sm:$0xff]
    %v496 = vld [vmem:[#allocation10 + $0x74] sm:$0xf]
    %v497 = vld [vmem:[#allocation10 + $0x78] sm:$0xff]
    %v498 = vld [vmem:[#allocation10 + $0x80] sm:$0xf]
    %v499 = vld [vmem:[#allocation10 + $0x84] sm:$0xff]
    %v500 = vld [vmem:[#allocation10 + $0x8c] sm:$0xf]
    %v501 = vld [vmem:[#allocation10 + $0x90] sm:$0xff]
    %v502 = vld [vmem:[#allocation10 + $0x98] sm:$0xf]
    %v503 = vld [vmem:[#allocation10 + $0x9c] sm:$0xff]
    %v504 = vld [vmem:[#allocation10 + $0xa4] sm:$0xf]
    %v505 = vld [vmem:[#allocation10 + $0xa8] sm:$0xff]
    %v506 = vld [vmem:[#allocation10 + $0xb0] sm:$0xf]
    %v507 = vld [vmem:[#allocation10 + $0xb4] sm:$0xff]
    %v508 = vld [vmem:[#allocation10 + $0xbc] sm:$0xf]
    %v509 = vld [vmem:[%s8] sm:$0x7]
    %v511 = vlaneseq
    %v512 = vshrl.u32 %v511, 7
    %v513 = vsub.s32 0, %v512
    %v514 = vrot.slane %v509, %v513
    %v515 = vlaneseq
    %v516 = vshrl.u32 %v515, 7
    %v517 = vsub.s32 1, %v516
    %v518 = vrot.slane %v509, %v517
    %v519 = vlaneseq
    %v520 = vshrl.u32 %v519, 7
    %v521 = vsub.s32 2, %v520
    %v522 = vrot.slane %v509, %v521
    %v558 = vunpack.c.l.b16 %v477
    %v559 = vunpack.c.h.b16 %v477
    %v560 = vunpack.c.l.b16 %v478
    %v561 = vunpack.c.l.b16 %v479
    %v562 = vunpack.c.h.b16 %v479
    %v563 = vunpack.c.l.b16 %v480
    %v564 = vunpack.c.l.b16 %v481
    %v565 = vunpack.c.h.b16 %v481
    %v566 = vunpack.c.l.b16 %v482
    %v567 = vunpack.c.l.b16 %v483
    %v568 = vunpack.c.h.b16 %v483
    %v569 = vunpack.c.l.b16 %v484
    %v570 = vunpack.c.l.b16 %v485
    %v571 = vunpack.c.h.b16 %v485
    %v572 = vunpack.c.l.b16 %v486
    %v573 = vunpack.c.l.b16 %v487
    %v574 = vunpack.c.h.b16 %v487
    %v575 = vunpack.c.l.b16 %v488
    %v576 = vunpack.c.l.b16 %v489
    %v577 = vunpack.c.h.b16 %v489
    %v578 = vunpack.c.l.b16 %v490
    %v579 = vunpack.c.l.b16 %v491
    %v580 = vunpack.c.h.b16 %v491
    %v581 = vunpack.c.l.b16 %v492
    %v582 = vunpack.c.l.b16 %v493
    %v583 = vunpack.c.h.b16 %v493
    %v584 = vunpack.c.l.b16 %v494
    %v585 = vunpack.c.l.b16 %v495
    %v586 = vunpack.c.h.b16 %v495
    %v587 = vunpack.c.l.b16 %v496
    %v588 = vunpack.c.l.b16 %v497
    %v589 = vunpack.c.h.b16 %v497
    %v590 = vunpack.c.l.b16 %v498
    %v591 = vunpack.c.l.b16 %v499
    %v592 = vunpack.c.h.b16 %v499
    %v593 = vunpack.c.l.b16 %v500
    %v594 = vunpack.c.l.b16 %v501
    %v595 = vunpack.c.h.b16 %v501
    %v596 = vunpack.c.l.b16 %v502
    %v597 = vunpack.c.l.b16 %v503
    %v598 = vunpack.c.h.b16 %v503
    %v599 = vunpack.c.l.b16 %v504
    %v600 = vunpack.c.l.b16 %v505
    %v601 = vunpack.c.h.b16 %v505
    %v602 = vunpack.c.l.b16 %v506
    %v603 = vunpack.c.l.b16 %v507
    %v604 = vunpack.c.h.b16 %v507
    %v605 = vunpack.c.l.b16 %v508
    %v606 = vpack.c.b16 %v561, %v558
    %v607 = vpack.c.b16 %v562, %v559
    %v608 = vpack.c.b16 %v563, %v560
    %v609 = vpack.c.b16 %v567, %v564
    %v610 = vpack.c.b16 %v568, %v565
    %v611 = vpack.c.b16 %v569, %v566
    %v612 = vpack.c.b16 %v573, %v570
    %v613 = vpack.c.b16 %v574, %v571
    %v614 = vpack.c.b16 %v575, %v572
    %v615 = vpack.c.b16 %v579, %v576
    %v616 = vpack.c.b16 %v580, %v577
    %v617 = vpack.c.b16 %v581, %v578
    %v618 = vpack.c.b16 %v585, %v582
    %v619 = vpack.c.b16 %v586, %v583
    %v620 = vpack.c.b16 %v587, %v584
    %v621 = vpack.c.b16 %v591, %v588
    %v622 = vpack.c.b16 %v592, %v589
    %v623 = vpack.c.b16 %v593, %v590
    %v624 = vpack.c.b16 %v597, %v594
    %v625 = vpack.c.b16 %v598, %v595
    %v626 = vpack.c.b16 %v599, %v596
    %v627 = vpack.c.b16 %v603, %v600
    %v628 = vpack.c.b16 %v604, %v601
    %v629 = vpack.c.b16 %v605, %v602
    %654 = vmatprep.subr.bf16.mxu0 %v607
    %655 = vmatpush1.bf16.msra.mxu0 %v606
    %656 = vmatprep.subr.bf16.mxu0 %v610
    %657 = vmatpush1.bf16.msra.mxu0 %v609
    %658 = vmatprep.subr.bf16.mxu0 %v613
    %659 = vmatpush1.bf16.msra.mxu0 %v612
    %660 = vmatprep.subr.bf16.mxu0 %v616
    %661 = vmatpush1.bf16.msra.mxu0 %v615
    %662 = vmatprep.subr.bf16.mxu0 %v619
    %663 = vmatpush1.bf16.msra.mxu0 %v618
    %664 = vmatprep.subr.bf16.mxu0 %v622
    %665 = vmatpush1.bf16.msra.mxu0 %v621
    %666 = vmatprep.subr.bf16.mxu0 %v625
    %667 = vmatpush1.bf16.msra.mxu0 %v624
    %668 = vmatprep.subr.bf16.mxu0 %v628
    %669 = vmatpush1.bf16.msra.mxu0 %v627
    %670 = vmatprep.subr.bf16.mxu0 0
    %671 = vmatpush1.bf16.msra.mxu0 0
    %672 = vmatprep.subr.bf16.mxu0 0
    %673 = vmatpush1.bf16.msra.mxu0 0
    %674 = vmatprep.subr.bf16.mxu0 0
    %675 = vmatpush1.bf16.msra.mxu0 0
    %676 = vmatprep.subr.bf16.mxu0 0
    %677 = vmatpush1.bf16.msra.mxu0 0
    %678 = vmatprep.subr.bf16.mxu0 0
    %679 = vmatpush1.bf16.msra.mxu0 0
    %680 = vmatprep.subr.bf16.mxu0 0
    %681 = vmatpush1.bf16.msra.mxu0 0
    %682 = vmatprep.subr.bf16.mxu0 0
    %683 = vmatpush1.bf16.msra.mxu0 0
    %684 = vmatprep.subr.bf16.mxu0 0
    %685 = vmatpush1.bf16.msra.mxu0 0
    %686 = vmatprep.mubr.bf16.mxu0 0
    %687 = vmatmul.mubr.bf16.gmra.mrb[0].mxu0 %v476
    %v688 = vpop.f32.mrb[0].mxu0
    %v689 = vadd.f32 %v514, %v688
    %v690 = vpop.f32.mrb[0].mxu0
    %v691 = vadd.f32 %v518, %v690
    %v692 = vpop.f32.mrb[0].mxu0
    %v693 = vpop.f32.mrb[0].mxu0
    %694 = vdwg.mxu0
    %695 = vmatprep.subr.bf16.mxu0 0
    %696 = vmatpush1.bf16.msra.mxu0 %v608
    %697 = vmatprep.subr.bf16.mxu0 0
    %698 = vmatpush1.bf16.msra.mxu0 %v611
    %699 = vmatprep.subr.bf16.mxu0 0
    %700 = vmatpush1.bf16.msra.mxu0 %v614
    %701 = vmatprep.subr.bf16.mxu0 0
    %702 = vmatpush1.bf16.msra.mxu0 %v617
    %703 = vmatprep.subr.bf16.mxu0 0
    %704 = vmatpush1.bf16.msra.mxu0 %v620
    %705 = vmatprep.subr.bf16.mxu0 0
    %706 = vmatpush1.bf16.msra.mxu0 %v623
    %707 = vmatprep.subr.bf16.mxu0 0
    %708 = vmatpush1.bf16.msra.mxu0 %v626
    %709 = vmatprep.subr.bf16.mxu0 0
    %710 = vmatpush1.bf16.msra.mxu0 %v629
    %711 = vmatprep.subr.bf16.mxu0 0
    %712 = vmatpush1.bf16.msra.mxu0 0
    %713 = vmatprep.subr.bf16.mxu0 0
    %714 = vmatpush1.bf16.msra.mxu0 0
    %715 = vmatprep.subr.bf16.mxu0 0
    %716 = vmatpush1.bf16.msra.mxu0 0
    %717 = vmatprep.subr.bf16.mxu0 0
    %718 = vmatpush1.bf16.msra.mxu0 0
    %719 = vmatprep.subr.bf16.mxu0 0
    %720 = vmatpush1.bf16.msra.mxu0 0
    %721 = vmatprep.subr.bf16.mxu0 0
    %722 = vmatpush1.bf16.msra.mxu0 0
    %723 = vmatprep.subr.bf16.mxu0 0
    %724 = vmatpush1.bf16.msra.mxu0 0
    %725 = vmatprep.subr.bf16.mxu0 0
    %726 = vmatpush1.bf16.msra.mxu0 0
    %727 = vmatprep.mubr.bf16.mxu0 0
    %728 = vmatmul.mubr.bf16.gmra.mrb[0].mxu0 %v476
    %v729 = vpop.f32.mrb[0].mxu0
    %v730 = vadd.f32 %v522, %v729
    %v731 = vpop.f32.mrb[0].mxu0
    %v732 = vpop.f32.mrb[0].mxu0
    %v733 = vpop.f32.mrb[0].mxu0
    %734 = vdwg.mxu0
    %v735 = vlaneseq
    %v736 = vand.u32 %v735, 127
    %v737 = vadd.s32 %v736, 128
    %v738 = vadd.s32 %v736, 256
    %vm739 = vcmp.lt.s32.totalorder %v736, 192
    %vm740 = vcmp.lt.s32.totalorder %v737, 192
    %vm741 = vcmp.lt.s32.totalorder %v738, 192
    %v742 = vxor.u32 %v689, 2147483648
    %v743 = vxor.u32 %v691, 2147483648
    %v744 = vxor.u32 %v730, 2147483648
    %v745 = vmul.f32 %v742, 1.442695
    %v746 = vpow.pop %v745
    %v747 = vmul.f32 %v743, 1.442695
    %v748 = vpow.pop %v747
    %v749 = vmul.f32 %v744, 1.442695
    %v750 = vpow.pop %v749
    %v751 = vadd.f32 %v746, 1.0
    %v752 = vadd.f32 %v748, 1.0
    %v753 = vadd.f32 %v750, 1.0
    %v754 = vrcp.pop %v751
    %v755 = vmul.f32 1.0, %v754
    %v756 = vrcp.pop %v752
    %v757 = vmul.f32 1.0, %v756
    %v758 = vrcp.pop %v753
    %v759 = vmul.f32 1.0, %v758
    %v760 = vsel %vm739, %v755, %v689
    %v761 = vsel %vm740, %v757, %v691
    %v762 = vsel %vm741, %v759, %v730
    %763 = vst [vmem:[#allocation11] sm:$0xff] %v760
    %764 = vst [vmem:[#allocation11 + $0x8] sm:$0xff] %v761
    %765 = vst [vmem:[#allocation11 + $0x10] sm:$0xff] %v762
    // Predicated region
    $region58: #{tpu_custom_call.1} parent=1 // pred_check
      _
    $region59: #{tpu_custom_call.1} parent=1 // pred_check_branch
      %767 = sbr.rel (0) target = $region61
    $region60: #{tpu_custom_call.1} parent=1 // pred_region
      %s769 = ssub.s32 384, 384
      %770 = vsyncadd [#allocation4], %s769
      %s772 = sshll.u32 [#allocation11], 4
      %s773 = int_to_ptr.vmem [resolvable:$true] %s772
      %775 = dma.vmem_to_hbm [thread:$0]  %s773, 384, %s9, [#allocation4]
    $region61: #{tpu_custom_call.1} parent=1 // pred_fallthru
      _
    // Predicated region
    $region62: #{tpu_custom_call.1} parent=1 // pred_check
      _
    $region63: #{tpu_custom_call.1} parent=1 // pred_check_branch
      %777 = sbr.rel (0) target = $region65
    $region64: #{tpu_custom_call.1} parent=1 // pred_region
      %778 = dma.done [#allocation4], 384
    $region65: #{tpu_custom_call.1} parent=1 // pred_fallthru
      _
    %779 = vsyncpa [#allocation3], 1
    %780 = vsyncpa [#allocation6], 1
    %781 = vsyncpa [#allocation9], 1
    %782 = vsyncpa [#allocation4], 1

</llo_original>
